<compile_context>
chip_gen: v6e
topology: v6e:2x2x1
jax: 0.10.0
libtpu: 0.0.40
codegen_flags: <defaults>
</compile_context>

<pallas_src>
import jax
import jax.numpy as jnp
import numpy as np
from jax.experimental import pallas as pl
from jax.experimental.pallas import tpu as pltpu


def attentive_encoder_kernel(x_ref, pos_ref, hid_ref, w_ref, c_ref):
    # x_ref:   (B_blk, M, d)  token embeddings for this batch block
    # pos_ref: (M, d)         position embeddings (resident, shared)
    # hid_ref: (B_blk, d)     decoder hidden state for this block
    # w_ref:   (q*d, d)       conv weight, W[k*d + i, o] = B[o, i, k] (resident)
    # c_ref:   (B_blk, d)     attended context output
    Bb, M, d = x_ref.shape
    q = w_ref.shape[0] // d
    pad = q // 2
    n = Bb * M

    xe = x_ref[...]                                    # (Bb, M, d)
    a2 = (xe + pos_ref[...]).reshape(n, d)             # (Bb*M, d) == x + x_pos

    # within-batch sequence index of every row, for masking conv boundary rows
    m_idx = jax.lax.broadcasted_iota(jnp.int32, (Bb, M, d), 1).reshape(n, d)

    # Build the q shifted copies of `a` (zero outside [0, M) inside each batch
    # row) with XLU rolls + VPU masks; concatenate along lanes so the whole
    # conv is a single (n, q*d) @ (q*d, d) MXU matmul.
    shifted = []
    for k in range(q):                                 # q is small & static
        s = k - pad
        if s == 0:
            ak = a2
        else:
            ak = pltpu.roll(a2, (-s) % n, 0)           # ak[m] = a2[(m + s) % n]
            valid = jnp.logical_and(m_idx + s >= 0, m_idx + s < M)
            ak = jnp.where(valid, ak, 0.0)             # zero-pad + kill cross-batch bleed
        shifted.append(ak)
    a_cat = jnp.concatenate(shifted, axis=1)           # (n, q*d)

    # z^T for the whole batch block in one MXU matmul (K = q*d)
    zT = jnp.dot(a_cat, w_ref[...],
                 preferred_element_type=jnp.float32).reshape(Bb, M, d)

    # s = hidden @ z, softmax over the sequence axis M (legacy implicit dim=0
    # on the (M, 1, batch)-transposed tensor == softmax over M)
    h = hid_ref[...]                                   # (Bb, d)
    scores = jnp.sum(zT * h[:, None, :], axis=2, keepdims=True)   # (Bb, M, 1)
    scores = scores - jnp.max(scores, axis=1, keepdims=True)
    e = jnp.exp(scores)
    denom = jnp.sum(e, axis=1, keepdims=True)          # (Bb, 1, 1)
    alphas = e * pl.reciprocal(denom, approx=True)     # (Bb, M, 1)

    # c = alphas^T @ x  -> one dense (Bb, d) store per step
    c_ref[...] = jnp.sum(alphas * xe, axis=1)


def attentive_encoder_forward(x_idx, hidden, y_idx, emb_w, pos_w, B,
                              *, target_rows=512):
    """Pallas implementation of Attentive_Encoder.forward.  Returns (c, y)."""
    batch, M = x_idx.shape
    d = emb_w.shape[1]
    q = B.shape[2]

    # ---- glue (embedding gathers / reshapes) in plain JAX ----
    # TODO(synk): nn.Dropout(p=0.2) is stochastic in training mode; treated as identity (eval).
    y_emb = jnp.take(emb_w, y_idx, axis=0)
    if y_emb.ndim < 3:
        y_emb = y_emb[:, None, :]                             # (batch, 1, d)

    x_emb = jnp.take(emb_w, x_idx, axis=0).astype(jnp.float32)    # (batch, M, d)
    pos_emb = pos_w[:M].astype(jnp.float32)                       # (M, d)
    # W[k*d + i, o] = B[o, i, k]
    w = jnp.transpose(B, (2, 1, 0)).reshape(q * d, d).astype(jnp.float32)
    hidden2 = hidden.reshape(batch, d).astype(jnp.float32)        # lane-dense (batch, d)

    # ---- block the batch dim so each grid step feeds the MXU ~target_rows rows ----
    b_blk = max(1, target_rows // M)
    if b_blk >= batch:
        b_blk = batch                      # one block == full dim (layout-legal)
    else:
        b_blk = max(8, (b_blk // 8) * 8)   # keep 2-D blocks 8-row aligned
    batch_p = pl.cdiv(batch, b_blk) * b_blk
    if batch_p != batch:
        # padded rows: token 0 + zero hidden -> uniform softmax, finite, sliced off below
        x_emb = jnp.pad(x_emb, ((0, batch_p - batch), (0, 0), (0, 0)))
        hidden2 = jnp.pad(hidden2, ((0, batch_p - batch), (0, 0)))

    c2 = pl.pallas_call(
        attentive_encoder_kernel,
        out_shape=jax.ShapeDtypeStruct((batch_p, d), jnp.float32),
        grid_spec=pltpu.PrefetchScalarGridSpec(
            num_scalar_prefetch=0,
            grid=(batch_p // b_blk,),
            in_specs=[
                pl.BlockSpec((b_blk, M, d), lambda b: (b, 0, 0)),   # x_emb block
                pl.BlockSpec((M, d), lambda b: (0, 0)),             # pos (resident)
                pl.BlockSpec((b_blk, d), lambda b: (b, 0)),         # hidden block
                pl.BlockSpec((q * d, d), lambda b: (0, 0)),         # conv weight (resident)
            ],
            out_specs=pl.BlockSpec((b_blk, d), lambda b: (b, 0)),
        ),
        compiler_params=pltpu.CompilerParams(
            dimension_semantics=("parallel",),   # distinct output block per step
        ),
    )(x_emb, pos_emb, hidden2, w)

    c = c2[:batch].reshape(batch, 1, d)
    return c, y_emb


def reference_forward(x_idx, hidden, y_idx, emb_w, pos_w, B):
    """Pure-JAX re-implementation of the PyTorch forward (for correctness check)."""
    q = B.shape[2]
    pad = q // 2
    y_emb = jnp.take(emb_w, y_idx, axis=0)
    if y_emb.ndim < 3:
        y_emb = y_emb[:, None, :]
    batch, M = x_idx.shape
    x_pos = jnp.broadcast_to(pos_w[:M][None], (batch, M, pos_w.shape[1]))
    x_emb = jnp.take(emb_w, x_idx, axis=0)
    a = jnp.transpose(x_emb + x_pos, (0, 2, 1))            # (batch, d, M)  == NCH
    z = jax.lax.conv_general_dilated(
        a, B, window_strides=(1,), padding=[(pad, pad)],
        dimension_numbers=("NCH", "OIH", "NCH"))           # (batch, d, M)
    s = jnp.matmul(hidden, z)                              # (batch, 1, M)
    # F.softmax(s.transpose(0,2)) with legacy implicit dim=0  ==  softmax over M
    alphas = jax.nn.softmax(s, axis=2)
    c = jnp.matmul(alphas, x_emb)                          # (batch, 1, d)
    return c, y_emb


if __name__ == "__main__":
    vocab_size, d, q = 50, 32, 3
    batch, M = 2, 8

    key = jax.random.PRNGKey(0)
    k1, k2, k3, k4, k5, k6 = jax.random.split(key, 6)
    # nn.Embedding default init ~ N(0, 1); B ~ U[0, 1) (torch.rand)
    emb_w = jax.random.normal(k1, (vocab_size, d), dtype=jnp.float32)
    pos_w = jax.random.normal(k2, (100, d), dtype=jnp.float32)
    B = jax.random.uniform(k3, (d, d, q), dtype=jnp.float32)

    x_idx = jax.random.randint(k4, (batch, M), 0, vocab_size, dtype=jnp.int32)
    y_idx = jax.random.randint(k5, (batch,), 0, vocab_size, dtype=jnp.int32)
    hidden = jax.random.uniform(k6, (batch, 1, d), dtype=jnp.float32)  # initHidden

    c, y_out = attentive_encoder_forward(x_idx, hidden, y_idx, emb_w, pos_w, B)
    jax.block_until_ready((c, y_out))

    c_ref, y_ref = reference_forward(x_idx, hidden, y_idx, emb_w, pos_w, B)
    # tolerance slightly loosened vs. 1e-4: softmax denom uses the EUP approx reciprocal
    np.testing.assert_allclose(np.asarray(c), np.asarray(c_ref), rtol=5e-3, atol=5e-3)
    np.testing.assert_allclose(np.asarray(y_out), np.asarray(y_ref), rtol=1e-6, atol=1e-6)

    print("KERNEL_OK")
</pallas_src>

<mosaic_0001>
module attributes {stable_mosaic.version = 11 : i64} {
  func.func @attentive_encoder_kernel(%arg0: i32, %arg1: memref<2x8x32xf32, #tpu.memory_space<vmem>>, %arg2: memref<8x32xf32, #tpu.memory_space<vmem>>, %arg3: memref<2x32xf32, #tpu.memory_space<vmem>>, %arg4: memref<96x32xf32, #tpu.memory_space<vmem>>, %arg5: memref<2x32xf32, #tpu.memory_space<vmem>>) attributes {dimension_semantics = [#tpu.dimension_semantics<parallel>], iteration_bounds = array<i64: 1>, scalar_prefetch = 0 : i64, scratch_operands = 0 : i64, tpu.core_type = #tpu.core_type<tc>, window_params = [{transform_indices = @transform_0, window_bounds = array<i64: 2, 8, 32>}, {pipeline_mode = #tpu.pipeline_mode<synchronous>, transform_indices = @transform_1, window_bounds = array<i64: 8, 32>}, {transform_indices = @transform_2, window_bounds = array<i64: 2, 32>}, {pipeline_mode = #tpu.pipeline_mode<synchronous>, transform_indices = @transform_3, window_bounds = array<i64: 96, 32>}, {transform_indices = @transform_4, window_bounds = array<i64: 2, 32>}]} {
    %c0 = arith.constant 0 : index
    %c0_0 = arith.constant 0 : index
    %c0_1 = arith.constant 0 : index
    %0 = vector.load %arg1[%c0, %c0_0, %c0_1] : memref<2x8x32xf32, #tpu.memory_space<vmem>>, vector<2x8x32xf32>
    %c0_2 = arith.constant 0 : index
    %c0_3 = arith.constant 0 : index
    %1 = vector.load %arg2[%c0_2, %c0_3] : memref<8x32xf32, #tpu.memory_space<vmem>>, vector<8x32xf32>
    %2 = vector.shape_cast %1 : vector<8x32xf32> to vector<1x8x32xf32>
    %3 = vector.broadcast %2 : vector<1x8x32xf32> to vector<2x8x32xf32>
    %4 = arith.addf %0, %3 : vector<2x8x32xf32>
    %5 = vector.shape_cast %4 : vector<2x8x32xf32> to vector<16x32xf32>
    %6 = tpu.iota {dimensions = array<i32: 1>} : vector<2x8x32xi32>
    %7 = vector.shape_cast %6 : vector<2x8x32xi32> to vector<16x32xi32>
    %c1_i32 = arith.constant 1 : i32
    %8 = tpu.dynamic_rotate %5 by %c1_i32 dim 0 : vector<16x32xf32>, i32 -> vector<16x32xf32>
    %c-1_i32 = arith.constant -1 : i32
    %9 = vector.broadcast %c-1_i32 : i32 to vector<16x32xi32>
    %10 = arith.addi %7, %9 : vector<16x32xi32>
    %c0_i32 = arith.constant 0 : i32
    %11 = vector.broadcast %c0_i32 : i32 to vector<16x32xi32>
    %12 = arith.cmpi sge, %10, %11 : vector<16x32xi32>
    %c-1_i32_4 = arith.constant -1 : i32
    %13 = vector.broadcast %c-1_i32_4 : i32 to vector<16x32xi32>
    %14 = arith.addi %7, %13 : vector<16x32xi32>
    %c8_i32 = arith.constant 8 : i32
    %15 = vector.broadcast %c8_i32 : i32 to vector<16x32xi32>
    %16 = arith.cmpi slt, %14, %15 : vector<16x32xi32>
    %17 = arith.andi %12, %16 : vector<16x32xi1>
    %cst = arith.constant 0.000000e+00 : f32
    %18 = vector.broadcast %cst : f32 to vector<16x32xf32>
    %19 = arith.select %17, %8, %18 : vector<16x32xi1>, vector<16x32xf32>
    %c15_i32 = arith.constant 15 : i32
    %20 = tpu.dynamic_rotate %5 by %c15_i32 dim 0 : vector<16x32xf32>, i32 -> vector<16x32xf32>
    %c1_i32_5 = arith.constant 1 : i32
    %21 = vector.broadcast %c1_i32_5 : i32 to vector<16x32xi32>
    %22 = arith.addi %7, %21 : vector<16x32xi32>
    %c0_i32_6 = arith.constant 0 : i32
    %23 = vector.broadcast %c0_i32_6 : i32 to vector<16x32xi32>
    %24 = arith.cmpi sge, %22, %23 : vector<16x32xi32>
    %c1_i32_7 = arith.constant 1 : i32
    %25 = vector.broadcast %c1_i32_7 : i32 to vector<16x32xi32>
    %26 = arith.addi %7, %25 : vector<16x32xi32>
    %c8_i32_8 = arith.constant 8 : i32
    %27 = vector.broadcast %c8_i32_8 : i32 to vector<16x32xi32>
    %28 = arith.cmpi slt, %26, %27 : vector<16x32xi32>
    %29 = arith.andi %24, %28 : vector<16x32xi1>
    %cst_9 = arith.constant 0.000000e+00 : f32
    %30 = vector.broadcast %cst_9 : f32 to vector<16x32xf32>
    %31 = arith.select %29, %20, %30 : vector<16x32xi1>, vector<16x32xf32>
    %32 = tpu.concatenate %19, %5, %31 in 1 : vector<16x32xf32>, vector<16x32xf32>, vector<16x32xf32> -> vector<16x96xf32>
    %c0_10 = arith.constant 0 : index
    %c0_11 = arith.constant 0 : index
    %33 = vector.load %arg4[%c0_10, %c0_11] : memref<96x32xf32, #tpu.memory_space<vmem>>, vector<96x32xf32>
    %cst_12 = arith.constant dense<0.000000e+00> : vector<16x32xf32>
    %34 = tpu.matmul %32, %33, %cst_12 {dimension_numbers = #tpu.dot_dimension_numbers<[1], [0], [0], [1], [0, 0, 1, 1], [], []>} : vector<16x96xf32>, vector<96x32xf32>, vector<16x32xf32> -> vector<16x32xf32>
    %35 = vector.shape_cast %34 : vector<16x32xf32> to vector<2x8x32xf32>
    %c0_13 = arith.constant 0 : index
    %c0_14 = arith.constant 0 : index
    %36 = vector.load %arg3[%c0_13, %c0_14] : memref<2x32xf32, #tpu.memory_space<vmem>>, vector<2x32xf32>
    %37 = vector.shape_cast %36 : vector<2x32xf32> to vector<2x1x32xf32>
    %38 = vector.broadcast %37 : vector<2x1x32xf32> to vector<2x8x32xf32>
    %39 = arith.mulf %35, %38 : vector<2x8x32xf32>
    %cst_15 = arith.constant dense<0.000000e+00> : vector<2x8xf32>
    %40 = vector.multi_reduction <add>, %39, %cst_15 [2] : vector<2x8x32xf32> to vector<2x8xf32>
    %41 = vector.shape_cast %40 : vector<2x8xf32> to vector<2x8x1xf32>
    %cst_16 = arith.constant dense<0xFF800000> : vector<2x1xf32>
    %42 = vector.multi_reduction <maximumf>, %41, %cst_16 [1] : vector<2x8x1xf32> to vector<2x1xf32>
    %43 = vector.shape_cast %42 : vector<2x1xf32> to vector<2x1x1xf32>
    %44 = vector.broadcast %43 : vector<2x1x1xf32> to vector<2x8x1xf32>
    %45 = arith.subf %41, %44 : vector<2x8x1xf32>
    %46 = math.exp %45 : vector<2x8x1xf32>
    %cst_17 = arith.constant dense<0.000000e+00> : vector<2x1xf32>
    %47 = vector.multi_reduction <add>, %46, %cst_17 [1] : vector<2x8x1xf32> to vector<2x1xf32>
    %48 = vector.shape_cast %47 : vector<2x1xf32> to vector<2x1x1xf32>
    %49 = tpu.reciprocal %48 {approx = true} : vector<2x1x1xf32> -> vector<2x1x1xf32>
    %50 = vector.broadcast %49 : vector<2x1x1xf32> to vector<2x8x1xf32>
    %51 = arith.mulf %46, %50 : vector<2x8x1xf32>
    %52 = vector.broadcast %51 : vector<2x8x1xf32> to vector<2x8x32xf32>
    %53 = arith.mulf %52, %0 : vector<2x8x32xf32>
    %cst_18 = arith.constant dense<0.000000e+00> : vector<2x32xf32>
    %54 = vector.multi_reduction <add>, %53, %cst_18 [1] : vector<2x8x32xf32> to vector<2x32xf32>
    %c0_19 = arith.constant 0 : index
    %c0_20 = arith.constant 0 : index
    %55 = vector.load %arg5[%c0_19, %c0_20] : memref<2x32xf32, #tpu.memory_space<vmem>>, vector<2x32xf32>
    tpu.vector_store %arg5[%c0_19, %c0_20], %54 {strides = array<i32>} : memref<2x32xf32, #tpu.memory_space<vmem>>, vector<2x32xf32>,
    return
  }
  func.func @transform_0(%arg0: i32) -> (i32, i32, i32) {
    %c0_i32 = arith.constant 0 : i32
    %c0_i32_0 = arith.constant 0 : i32
    %c0_i32_1 = arith.constant 0 : i32
    return %arg0, %c0_i32, %c0_i32_0 : i32, i32, i32
  }
  func.func @transform_1(%arg0: i32) -> (i32, i32) {
    %c0_i32 = arith.constant 0 : i32
    %c0_i32_0 = arith.constant 0 : i32
    %c0_i32_1 = arith.constant 0 : i32
    return %c0_i32, %c0_i32_0 : i32, i32
  }
  func.func @transform_2(%arg0: i32) -> (i32, i32) {
    %c0_i32 = arith.constant 0 : i32
    %c0_i32_0 = arith.constant 0 : i32
    return %arg0, %c0_i32 : i32, i32
  }
  func.func @transform_3(%arg0: i32) -> (i32, i32) {
    %c0_i32 = arith.constant 0 : i32
    %c0_i32_0 = arith.constant 0 : i32
    %c0_i32_1 = arith.constant 0 : i32
    return %c0_i32, %c0_i32_0 : i32, i32
  }
  func.func @transform_4(%arg0: i32) -> (i32, i32) {
    %c0_i32 = arith.constant 0 : i32
    %c0_i32_0 = arith.constant 0 : i32
    return %arg0, %c0_i32 : i32, i32
  }
}

</mosaic_0001>

<llo_original>
// kernel: tpu_custom_call.1
$region0: #{tpu_custom_call.1}
  #allocation0 [shape = 'u32[]', space=smem, size = 0x4, offset = 0x4, fixed_abs, tag = 'smem constant byte address 0x4 - core index']
  #allocation1 [shape = 'u32[144,128]{1,0:T(1,128)}', space=vmem, size = 0x12000, scoped, tag = 'internal scratch']
  %s0 = inlined_call_operand.vmem [shape: f32[2,8,32], index: 0, kind: input, shape index: {}]
  %s1 = inlined_call_operand.vmem [shape: f32[8,32], index: 1, kind: input, shape index: {}]
  %s2 = inlined_call_operand.vmem [shape: f32[2,32], index: 2, kind: input, shape index: {}]
  %s3 = inlined_call_operand.vmem [shape: f32[96,32], index: 3, kind: input, shape index: {}]
  %s4 = inlined_call_operand.hbm [shape: f32[2,32], index: 4, kind: output, shape index: {}]
  %s5 = sld [smem:[#allocation0]]
  $region26: #{tpu_custom_call.1} parent=0
    _
  %s7 = ssub.s32 1, %s5
  %s8 = scalar_select 0, %s7, %s5
  $region1: #{tpu_custom_call.1} parent=0
    #allocation2 [shape = 'u8[1024]{0}', space=vmem, size = 0x400, scoped, tag = 'output window, operand 0, single buffered']
    #allocation3 [shape = 's32[1]{0}', space=sflag, size = 0x4, scoped, tag = 'scoped memory for tpu_custom_call.1']
    %9 = vsyncpa [#allocation3], 0
    // Predicated region
    $region2: #{tpu_custom_call.1} parent=1 // pred_check
      _
    $region3: #{tpu_custom_call.1} parent=1 // pred_check_branch
      %11 = sbr.rel (0) target = $region5
    $region4: #{tpu_custom_call.1} parent=1 // pred_region
      _
    $region5: #{tpu_custom_call.1} parent=1 // pred_fallthru
      _
    // Predicated region
    $region6: #{tpu_custom_call.1} parent=1 // pred_check
      _
    $region7: #{tpu_custom_call.1} parent=1 // pred_check_branch
      %13 = sbr.rel (0) target = $region9
    $region8: #{tpu_custom_call.1} parent=1 // pred_region
      _
    $region9: #{tpu_custom_call.1} parent=1 // pred_fallthru
      _
    // Predicated region
    $region10: #{tpu_custom_call.1} parent=1 // pred_check
      _
    $region11: #{tpu_custom_call.1} parent=1 // pred_check_branch
      %15 = sbr.rel (0) target = $region13
    $region12: #{tpu_custom_call.1} parent=1 // pred_region
      _
    $region13: #{tpu_custom_call.1} parent=1 // pred_fallthru
      _
    // Predicated region
    $region14: #{tpu_custom_call.1} parent=1 // pred_check
      _
    $region15: #{tpu_custom_call.1} parent=1 // pred_check_branch
      %17 = sbr.rel (0) target = $region17
    $region16: #{tpu_custom_call.1} parent=1 // pred_region
      _
    $region17: #{tpu_custom_call.1} parent=1 // pred_fallthru
      _
    %v18 = vld [vmem:[%s0] sm:$0xff]
    %v19 = vld [vmem:[%s0 + $0x8] sm:$0xff]
    %v20 = vld [vmem:[%s1] sm:$0xff]
    %v21 = vadd.f32 %v18, %v20
    %v22 = vadd.f32 %v19, %v20
    %v23 = vlaneseq
    %v24 = vshrl.u32 %v23, 7
    %v25 = vrot.slane %v21, 7
    %v26 = vrot.slane %v22, 7
    %vm27 = vcmp.lt.s32.totalorder %v24, 1
    %v28 = vsel %vm27, %v25, %v26
    %v29 = vsel %vm27, %v26, %v25
    %v30 = vadd.s32 %v24, 4294967295
    %vm31 = vcmp.ge.s32.totalorder %v30, 0
    %vm32 = vcmp.lt.s32.totalorder %v30, 8
    %vm33 = vmand %vm31, %vm32
    %v34 = vsel %vm33, %v29, 0.0
    %v35 = vsel %vm33, %v28, 0.0
    %v36 = vrot.slane %v21, 1
    %v37 = vrot.slane %v22, 1
    %vm38 = vcmp.lt.s32.totalorder %v24, 7
    %v39 = vsel %vm38, %v36, %v37
    %v40 = vsel %vm38, %v37, %v36
    %v41 = vadd.s32 %v24, 1
    %vm42 = vcmp.ge.s32.totalorder %v41, 0
    %vm43 = vcmp.lt.s32.totalorder %v41, 8
    %vm44 = vmand %vm42, %vm43
    %v45 = vsel %vm44, %v39, 0.0
    %v46 = vsel %vm44, %v40, 0.0
    %49 = vrot.lane.b32.xlu0 %v21, 32
    %v50 = vpop.permute.xlu0 %49
    %51 = vrot.lane.b32.xlu0 %v22, 32
    %v52 = vpop.permute.xlu0 %51
    %57 = vrot.lane.b32.xlu0 %v45, 64
    %v58 = vpop.permute.xlu0 %57
    %59 = vrot.lane.b32.xlu0 %v46, 64
    %v60 = vpop.permute.xlu0 %59
    %vm63 = vcmask 261120
    %v64 = vsel %vm63, %v34, %v50
    %v65 = vsel %vm63, %v35, %v52
    %vm66 = vcmask 523264
    %v67 = vsel %vm66, %v64, %v58
    %v68 = vsel %vm66, %v65, %v60
    %v69 = vld [vmem:[%s3] sm:$0xff]
    %v70 = vld [vmem:[%s3 + $0x8] sm:$0xff]
    %v71 = vld [vmem:[%s3 + $0x10] sm:$0xff]
    %v72 = vld [vmem:[%s3 + $0x18] sm:$0xff]
    %v73 = vld [vmem:[%s3 + $0x20] sm:$0xff]
    %v74 = vld [vmem:[%s3 + $0x28] sm:$0xff]
    %v75 = vld [vmem:[%s3 + $0x30] sm:$0xff]
    %v76 = vld [vmem:[%s3 + $0x38] sm:$0xff]
    %v77 = vld [vmem:[%s3 + $0x40] sm:$0xff]
    %v78 = vld [vmem:[%s3 + $0x48] sm:$0xff]
    %v79 = vld [vmem:[%s3 + $0x50] sm:$0xff]
    %v80 = vld [vmem:[%s3 + $0x58] sm:$0xff]
    %vm81 = vcmask 785408
    %v83 = vsel %vm81, %v67, 0
    %v86 = vsel %vm81, %v68, 0
    %88 = vmatprep.subr.mxu0 0.0
    %89 = vmatpush1.msra.mxu0 0.0
    %90 = vmatprep.subr.mxu0 0.0
    %91 = vmatpush1.msra.mxu0 0.0
    %92 = vmatprep.subr.mxu0 0.0
    %93 = vmatpush1.msra.mxu0 0.0
    %94 = vmatprep.subr.mxu0 0.0
    %95 = vmatpush1.msra.mxu0 0.0
    %96 = vmatprep.subr.mxu0 0.0
    %97 = vmatpush1.msra.mxu0 %v80
    %98 = vmatprep.subr.mxu0 0.0
    %99 = vmatpush1.msra.mxu0 %v79
    %100 = vmatprep.subr.mxu0 0.0
    %101 = vmatpush1.msra.mxu0 %v78
    %102 = vmatprep.subr.mxu0 0.0
    %103 = vmatpush1.msra.mxu0 %v77
    %104 = vmatprep.subr.mxu0 0.0
    %105 = vmatpush1.msra.mxu0 %v76
    %106 = vmatprep.subr.mxu0 0.0
    %107 = vmatpush1.msra.mxu0 %v75
    %108 = vmatprep.subr.mxu0 0.0
    %109 = vmatpush1.msra.mxu0 %v74
    %110 = vmatprep.subr.mxu0 0.0
    %111 = vmatpush1.msra.mxu0 %v73
    %112 = vmatprep.subr.mxu0 0.0
    %113 = vmatpush1.msra.mxu0 %v72
    %114 = vmatprep.subr.mxu0 0.0
    %115 = vmatpush1.msra.mxu0 %v71
    %116 = vmatprep.subr.mxu0 0.0
    %117 = vmatpush1.msra.mxu0 %v70
    %118 = vmatprep.subr.mxu0 0.0
    %119 = vmatpush1.msra.mxu0 %v69
    %120 = vmatprep.subr.mxu0 0.0
    %121 = vmatpush2.msra.mxu0 0.0
    %122 = vmatprep.subr.mxu0 0.0
    %123 = vmatpush2.msra.mxu0 0.0
    %124 = vmatprep.subr.mxu0 0.0
    %125 = vmatpush2.msra.mxu0 0.0
    %126 = vmatprep.subr.mxu0 0.0
    %127 = vmatpush2.msra.mxu0 0.0
    %128 = vmatprep.subr.mxu0 0.0
    %129 = vmatpush2.msra.mxu0 0.0
    %130 = vmatprep.subr.mxu0 0.0
    %131 = vmatpush2.msra.mxu0 0.0
    %132 = vmatprep.subr.mxu0 0.0
    %133 = vmatpush2.msra.mxu0 0.0
    %134 = vmatprep.subr.mxu0 0.0
    %135 = vmatpush2.msra.mxu0 0.0
    %136 = vmatprep.subr.mxu0 0.0
    %137 = vmatpush2.msra.mxu0 0.0
    %138 = vmatprep.subr.mxu0 0.0
    %139 = vmatpush2.msra.mxu0 0.0
    %140 = vmatprep.subr.mxu0 0.0
    %141 = vmatpush2.msra.mxu0 0.0
    %142 = vmatprep.subr.mxu0 0.0
    %143 = vmatpush2.msra.mxu0 0.0
    %144 = vmatprep.subr.mxu0 0.0
    %145 = vmatpush2.msra.mxu0 0.0
    %146 = vmatprep.subr.mxu0 0.0
    %147 = vmatpush2.msra.mxu0 0.0
    %148 = vmatprep.subr.mxu0 0.0
    %149 = vmatpush2.msra.mxu0 0.0
    %150 = vmatprep.subr.mxu0 0.0
    %151 = vmatpush2.msra.mxu0 0.0
    %152 = vmatprep.mubr.f32.mxu0 0.0
    %153 = vmatmul.mubr.f32.gmra.mxu0 %v83
    %v154 = vpop.f32.mrf.mxu0
    %v155 = vadd.f32 0.0, %v154
    %v156 = vpop.f32.mrf.mxu0
    %157 = vmatprep.mubr.f32.mxu0 0.0
    %158 = vmatmul.mubr.f32.gmra.mxu0 %v86
    %v159 = vpop.f32.mrf.mxu0
    %v160 = vadd.f32 0.0, %v159
    %v161 = vpop.f32.mrf.mxu0
    %162 = vdwg.mxu0
    %v163 = vld [vmem:[%s2] sm:$0x3]
    %v166 = vunpack.c.l.s4 1966171168
    %v167 = vunpack.c.0.s8 %v166
    %v168 = vlaneseq
    %v169 = vshrl.u32 %v168, 7
    %v170 = vsub.s32 %v167, %v169
    %v171 = vrot.slane %v163, %v170
    %v172 = vcombine.high %v171, %v171
    %v174 = vunpack.c.l.s4 1966171168
    %v175 = vunpack.c.0.s8 %v174
    %v176 = vlaneseq
    %v177 = vshrl.u32 %v176, 7
    %v178 = vsub.s32 %v175, %v177
    %v179 = vrot.slane %v171, %v178
    %v181 = vunpack.c.l.s4 1966171168
    %v182 = vunpack.c.0.s8 %v181
    %v183 = vlaneseq
    %v184 = vshrl.u32 %v183, 7
    %v185 = vsub.s32 %v182, %v184
    %v186 = vrot.slane %v172, %v185
    %v187 = vlaneseq
    %v188 = vshrl.u32 %v187, 7
    %v189 = vsub.s32 0, %v188
    %v190 = vrot.slane %v179, %v189
    %v191 = vlaneseq
    %v192 = vshrl.u32 %v191, 7
    %v193 = vsub.s32 0, %v192
    %v194 = vrot.slane %v186, %v193
    %v197 = vmul.f32 %v155, %v190
    %v198 = vmul.f32 %v160, %v194
    %v199 = vsel %vm63, %v197, 0.0
    %200 = vadd.xlane.f32.xlu0 %v199
    %v201 = vpop.xlane.xlu0 %200
    %v202 = vsel %vm63, %v198, 0.0
    %203 = vadd.xlane.f32.xlu0 %v202
    %v204 = vpop.xlane.xlu0 %203
    %v205 = vrot.slane %v201, 4
    %v206 = vmax.f32 %v201, %v205
    %v207 = vrot.slane %v206, 2
    %v208 = vmax.f32 %v206, %v207
    %v209 = vrot.slane %v208, 1
    %v210 = vmax.f32 %v208, %v209
    %v211 = vrot.slane %v204, 4
    %v212 = vmax.f32 %v204, %v211
    %v213 = vrot.slane %v212, 2
    %v214 = vmax.f32 %v212, %v213
    %v215 = vrot.slane %v214, 1
    %v216 = vmax.f32 %v214, %v215
    %v217 = vsub.f32 %v201, %v210
    %v218 = vsub.f32 %v204, %v216
    %v219 = vmul.f32 %v217, 1.442695
    %v220 = vpow.pop %v219
    %v221 = vmul.f32 %v218, 1.442695
    %v222 = vpow.pop %v221
    %v223 = vrot.slane %v220, 4
    %v224 = vadd.f32 %v220, %v223
    %v225 = vrot.slane %v224, 2
    %v226 = vadd.f32 %v224, %v225
    %v227 = vrot.slane %v226, 1
    %v228 = vadd.f32 %v226, %v227
    %v229 = vrot.slane %v222, 4
    %v230 = vadd.f32 %v222, %v229
    %v231 = vrot.slane %v230, 2
    %v232 = vadd.f32 %v230, %v231
    %v233 = vrot.slane %v232, 1
    %v234 = vadd.f32 %v232, %v233
    %v235 = vrcp.pop %v228
    %v236 = vrcp.pop %v234
    %v237 = vmul.f32 %v220, %v235
    %v238 = vmul.f32 %v222, %v236
    %v239 = vmul.f32 %v237, %v18
    %v240 = vmul.f32 %v238, %v19
    %v241 = vsel %vm63, %v239, 0.0
    %v242 = vrot.slane %v241, 4
    %v243 = vadd.f32 %v241, %v242
    %v244 = vrot.slane %v243, 2
    %v245 = vadd.f32 %v243, %v244
    %v246 = vrot.slane %v245, 1
    %v247 = vadd.f32 %v245, %v246
    %v248 = vsel %vm63, %v240, 0.0
    %v249 = vrot.slane %v248, 4
    %v250 = vadd.f32 %v248, %v249
    %v251 = vrot.slane %v250, 2
    %v252 = vadd.f32 %v250, %v251
    %v253 = vrot.slane %v252, 1
    %v254 = vadd.f32 %v252, %v253
    %vm257 = vcmask 1041409
    %v258 = vsel %vm257, %v254, %v247
    %vm260 = vcmask 254976
    %261 = vst.msk [vmem:[#allocation2] sm:$0x3] %vm260, %v258
    // Predicated region
    $region18: #{tpu_custom_call.1} parent=1 // pred_check
      _
    $region19: #{tpu_custom_call.1} parent=1 // pred_check_branch
      %263 = sbr.rel (0) target = $region21
    $region20: #{tpu_custom_call.1} parent=1 // pred_region
      %s265 = ssub.s32 32, 32
      %266 = vsyncadd [#allocation3], %s265
      %s268 = sshll.u32 [#allocation2], 4
      %s269 = int_to_ptr.vmem [resolvable:$true] %s268
      %271 = dma.vmem_to_hbm [thread:$0]  %s269, 32, %s4, [#allocation3]
    $region21: #{tpu_custom_call.1} parent=1 // pred_fallthru
      _
    // Predicated region
    $region22: #{tpu_custom_call.1} parent=1 // pred_check
      _
    $region23: #{tpu_custom_call.1} parent=1 // pred_check_branch
      %273 = sbr.rel (0) target = $region25
    $region24: #{tpu_custom_call.1} parent=1 // pred_region
      %274 = dma.done [#allocation3], 32
    $region25: #{tpu_custom_call.1} parent=1 // pred_fallthru
      _
    %275 = vsyncpa [#allocation3], 1

</llo_original>
